<compile_context>
chip_gen: v7x
topology: tpu7x:2x2x1
jax: 0.10.0
libtpu: 0.0.40
codegen_flags: <defaults>
</compile_context>

<pallas_src>
import jax
import jax.numpy as jnp
from jax import lax
from jax.experimental import pallas as pl
from jax.experimental.pallas import tpu as pltpu


def critic_kernel(s_ref, a_ref, w1s_ref, w1a_ref, b1_ref,
                  w2_ref, b2_ref, w3_ref, b3_ref, o_ref):
    # fc1 over the split weight (no concatenated activations anywhere).
    # Activations arrive f32 from HBM; bf16 cast happens here on the VPU.
    s_bf = s_ref[...].astype(jnp.bfloat16)
    a_bf = a_ref[...].astype(jnp.bfloat16)
    h1 = jnp.dot(s_bf, w1s_ref[...], preferred_element_type=jnp.float32)
    h1 = h1 + jnp.dot(a_bf, w1a_ref[...], preferred_element_type=jnp.float32)
    h1 = jnp.maximum(h1 + b1_ref[...], 0.0)                     # f32 elementwise

    # fc2: bf16 operands on the MXU, f32 accumulate.
    # NOTE: h1 is rounded to bf16 here; error grows with hidden_dim (documented).
    h2 = jnp.dot(h1.astype(jnp.bfloat16), w2_ref[...],
                 preferred_element_type=jnp.float32)
    h2 = jnp.maximum(h2 + b2_ref[...], 0.0)

    # out layer (N=1) -> produce a lane-dense (1, TB) row directly:
    # contract hidden between w3 (1, hidden) and h2 (TB, hidden).
    q_row = lax.dot_general(w3_ref[...], h2,
                            dimension_numbers=(((1,), (1,)), ((), ())),
                            preferred_element_type=jnp.float32)
    o_ref[...] = (q_row + b3_ref[0]).astype(o_ref.dtype)


def _round_up(x, m):
    return ((x + m - 1) // m) * m


def prepare_params(params, s_dim):
    """One-time (init / param-update time) weight prep: split w1 on the state /
    action boundary and cast matmul weights to bf16. Done ONCE, not per call."""
    w1, b1, w2, b2, w3, b3 = params
    hidden = w1.shape[1]
    return (
        w1[:s_dim].astype(jnp.bfloat16),          # w1_s  (s_dim, hidden)
        w1[s_dim:].astype(jnp.bfloat16),          # w1_a  (a_dim, hidden)
        b1.reshape(1, hidden).astype(jnp.float32),
        w2.astype(jnp.bfloat16),                  # (hidden, hidden)
        b2.reshape(1, hidden).astype(jnp.float32),
        w3.reshape(1, hidden).astype(jnp.float32),  # out weight as a row
        b3.reshape(1).astype(jnp.float32),          # scalar -> SMEM
    )


def critic_forward(s, a, kparams, *, block_b=1024):
    """Pallas Critic forward. s: (B, s_dim) f32, a: (B, a_dim) f32.
    kparams from prepare_params(). Returns (B, 1) f32."""
    w1s, w1a, b1, w2, b2, w3_row, b3 = kparams
    B, s_dim = s.shape
    a_dim = a.shape[1]
    hidden = w1s.shape[1]

    # ---- batch tile choice -------------------------------------------------
    # Tile is a multiple of 8 sublanes. If more than one tile is needed, keep it
    # a multiple of 128 so the (1, TB) output block is lane-dense, and cap it at
    # ~ceil(B/2) so there are >= 2 grid steps (v7x megacore gets both TCs).
    block_b = max(128, 128 * (block_b // 128))
    two_tile = _round_up(pl.cdiv(B, 2), 128)
    TB = min(block_b, two_tile)
    if TB >= _round_up(B, 8):
        TB = _round_up(B, 8)                      # single tile covers the batch
    B_pad = _round_up(B, TB)
    if B_pad != B:
        # TODO(synk): could rely on Pallas overhanging last-block semantics to
        # avoid this extra XLA pad pass; kept explicit for portability.
        s = jnp.pad(s, ((0, B_pad - B), (0, 0)))
        a = jnp.pad(a, ((0, B_pad - B), (0, 0)))

    grid = (B_pad // TB,)
    resident = lambda shape: pl.BlockSpec(shape, lambda i: (0, 0))  # VMEM-resident

    # ---- scoped VMEM budget (v5e default is only 16 MiB; v7x physical 64 MiB)
    est = (
        4 * TB * (s_dim + a_dim) * 4              # s/a f32 tiles, double-buffered
        + 2 * ((s_dim + a_dim) * hidden * 2 + hidden * hidden * 2)  # bf16 weights x2
        + 8 * hidden * 4                          # biases + w3 row (f32, x2)
        + 4 * TB * 4                              # output row, double-buffered
        + 3 * TB * hidden * 4                     # h1/h2 f32 + bf16 temporaries
        + (4 << 20)                               # slack for compiler scratch
    )
    vmem_limit = int(min(max(est, 32 << 20), 64 << 20))

    out = pl.pallas_call(
        critic_kernel,
        out_shape=jax.ShapeDtypeStruct((1, B_pad), jnp.float32),
        grid_spec=pl.GridSpec(
            grid=grid,
            in_specs=[
                pl.BlockSpec((TB, s_dim), lambda i: (i, 0)),   # s tile (f32)
                pl.BlockSpec((TB, a_dim), lambda i: (i, 0)),   # a tile (f32)
                resident((s_dim, hidden)),                     # w1[:s_dim] bf16
                resident((a_dim, hidden)),                     # w1[s_dim:] bf16
                resident((1, hidden)),                         # b1 f32
                resident((hidden, hidden)),                    # w2 bf16
                resident((1, hidden)),                         # b2 f32
                resident((1, hidden)),                         # w3 row f32
                pl.BlockSpec(memory_space=pltpu.MemorySpace.SMEM),  # b3 scalar
            ],
            out_specs=pl.BlockSpec((1, TB), lambda i: (0, i)),  # lane-dense row
        ),
        compiler_params=pltpu.CompilerParams(
            dimension_semantics=("parallel",),   # shard batch tiles on v7x megacore
            vmem_limit_bytes=vmem_limit,
        ),
    )(s, a, w1s, w1a, b1, w2, b2, w3_row, b3)
    return out[0, :B].reshape(B, 1)


def init_params(key, s_dim, a_dim, hidden_dim=256):
    """Deterministic init mimicking PyTorch nn.Linear default (uniform +-1/sqrt(fan_in)).
    Weights are stored already transposed to (in, out)."""
    def linear(key, fan_in, fan_out):
        kw, kb = jax.random.split(key)
        bound = 1.0 / jnp.sqrt(fan_in)
        w = jax.random.uniform(kw, (fan_in, fan_out), jnp.float32, -bound, bound)
        b = jax.random.uniform(kb, (1, fan_out), jnp.float32, -bound, bound)
        return w, b

    k1, k2, k3 = jax.random.split(key, 3)
    w1, b1 = linear(k1, s_dim + a_dim, hidden_dim)
    w2, b2 = linear(k2, hidden_dim, hidden_dim)
    w3, b3 = linear(k3, hidden_dim, 1)
    return (w1, b1, w2, b2, w3, b3)


def critic_ref(s, a, params):
    w1, b1, w2, b2, w3, b3 = params
    x = jnp.concatenate([s, a], axis=1)
    x = jax.nn.relu(x @ w1 + b1)
    x = jax.nn.relu(x @ w2 + b2)
    return x @ w3 + b3


if __name__ == "__main__":
    key = jax.random.PRNGKey(0)
    k_s, k_a, k_p = jax.random.split(key, 3)

    B, s_dim, a_dim, hidden = 8, 12, 4, 32
    s = jax.random.normal(k_s, (B, s_dim), jnp.float32)
    a = jax.random.normal(k_a, (B, a_dim), jnp.float32)
    params = init_params(k_p, s_dim, a_dim, hidden)
    kparams = prepare_params(params, s_dim)   # one-time bf16 cast / fc1 split

    out = critic_forward(s, a, kparams)
    out = jax.block_until_ready(out)

    ref = critic_ref(s, a, params)
    assert out.shape == (B, 1)
    # bf16 matmul operands (f32 accumulate) -> looser tolerance vs the f32 reference
    assert jnp.allclose(out, ref, atol=5e-2, rtol=5e-2), "mismatch vs JAX reference"
    print("KERNEL_OK")
</pallas_src>

<mosaic_0001>
module attributes {stable_mosaic.version = 11 : i64} {
  func.func @critic_kernel(%arg0: i32, %arg1: memref<8x12xf32, #tpu.memory_space<vmem>>, %arg2: memref<8x4xf32, #tpu.memory_space<vmem>>, %arg3: memref<12x32xbf16, #tpu.memory_space<vmem>>, %arg4: memref<4x32xbf16, #tpu.memory_space<vmem>>, %arg5: memref<1x32xf32, #tpu.memory_space<vmem>>, %arg6: memref<32x32xbf16, #tpu.memory_space<vmem>>, %arg7: memref<1x32xf32, #tpu.memory_space<vmem>>, %arg8: memref<1x32xf32, #tpu.memory_space<vmem>>, %arg9: memref<1xf32, #tpu.memory_space<smem>>, %arg10: memref<1x8xf32, #tpu.memory_space<vmem>>) attributes {dimension_semantics = [#tpu.dimension_semantics<parallel>], iteration_bounds = array<i64: 1>, scalar_prefetch = 0 : i64, scratch_operands = 0 : i64, tpu.core_type = #tpu.core_type<tc>, window_params = [{transform_indices = @transform_0, window_bounds = array<i64: 8, 12>}, {transform_indices = @transform_1, window_bounds = array<i64: 8, 4>}, {pipeline_mode = #tpu.pipeline_mode<synchronous>, transform_indices = @transform_2, window_bounds = array<i64: 12, 32>}, {pipeline_mode = #tpu.pipeline_mode<synchronous>, transform_indices = @transform_3, window_bounds = array<i64: 4, 32>}, {pipeline_mode = #tpu.pipeline_mode<synchronous>, transform_indices = @transform_4, window_bounds = array<i64: 1, 32>}, {pipeline_mode = #tpu.pipeline_mode<synchronous>, transform_indices = @transform_5, window_bounds = array<i64: 32, 32>}, {pipeline_mode = #tpu.pipeline_mode<synchronous>, transform_indices = @transform_6, window_bounds = array<i64: 1, 32>}, {pipeline_mode = #tpu.pipeline_mode<synchronous>, transform_indices = @transform_7, window_bounds = array<i64: 1, 32>}, {transform_indices = @transform_8, window_bounds = array<i64: 1>}, {transform_indices = @transform_9, window_bounds = array<i64: 1, 8>}]} {
    %c0 = arith.constant 0 : index
    %c0_0 = arith.constant 0 : index
    %0 = vector.load %arg1[%c0, %c0_0] : memref<8x12xf32, #tpu.memory_space<vmem>>, vector<8x12xf32>
    %1 = arith.truncf %0 : vector<8x12xf32> to vector<8x12xbf16>
    %c0_1 = arith.constant 0 : index
    %c0_2 = arith.constant 0 : index
    %2 = vector.load %arg2[%c0_1, %c0_2] : memref<8x4xf32, #tpu.memory_space<vmem>>, vector<8x4xf32>
    %3 = arith.truncf %2 : vector<8x4xf32> to vector<8x4xbf16>
    %c0_3 = arith.constant 0 : index
    %c0_4 = arith.constant 0 : index
    %4 = vector.load %arg3[%c0_3, %c0_4] : memref<12x32xbf16, #tpu.memory_space<vmem>>, vector<12x32xbf16>
    %cst = arith.constant dense<0.000000e+00> : vector<8x32xf32>
    %5 = tpu.matmul %1, %4, %cst {dimension_numbers = #tpu.dot_dimension_numbers<[1], [0], [0], [1], [0, 0, 1, 1], [], []>} : vector<8x12xbf16>, vector<12x32xbf16>, vector<8x32xf32> -> vector<8x32xf32>
    %c0_5 = arith.constant 0 : index
    %c0_6 = arith.constant 0 : index
    %6 = vector.load %arg4[%c0_5, %c0_6] : memref<4x32xbf16, #tpu.memory_space<vmem>>, vector<4x32xbf16>
    %cst_7 = arith.constant dense<0.000000e+00> : vector<8x32xf32>
    %7 = tpu.matmul %3, %6, %cst_7 {dimension_numbers = #tpu.dot_dimension_numbers<[1], [0], [0], [1], [0, 0, 1, 1], [], []>} : vector<8x4xbf16>, vector<4x32xbf16>, vector<8x32xf32> -> vector<8x32xf32>
    %8 = arith.addf %5, %7 : vector<8x32xf32>
    %c0_8 = arith.constant 0 : index
    %c0_9 = arith.constant 0 : index
    %9 = vector.load %arg5[%c0_8, %c0_9] : memref<1x32xf32, #tpu.memory_space<vmem>>, vector<1x32xf32>
    %10 = vector.broadcast %9 : vector<1x32xf32> to vector<8x32xf32>
    %11 = arith.addf %8, %10 : vector<8x32xf32>
    %cst_10 = arith.constant 0.000000e+00 : f32
    %12 = vector.broadcast %cst_10 : f32 to vector<8x32xf32>
    %13 = arith.maximumf %11, %12 : vector<8x32xf32>
    %14 = arith.truncf %13 : vector<8x32xf32> to vector<8x32xbf16>
    %c0_11 = arith.constant 0 : index
    %c0_12 = arith.constant 0 : index
    %15 = vector.load %arg6[%c0_11, %c0_12] : memref<32x32xbf16, #tpu.memory_space<vmem>>, vector<32x32xbf16>
    %cst_13 = arith.constant dense<0.000000e+00> : vector<8x32xf32>
    %16 = tpu.matmul %14, %15, %cst_13 {dimension_numbers = #tpu.dot_dimension_numbers<[1], [0], [0], [1], [0, 0, 1, 1], [], []>} : vector<8x32xbf16>, vector<32x32xbf16>, vector<8x32xf32> -> vector<8x32xf32>
    %c0_14 = arith.constant 0 : index
    %c0_15 = arith.constant 0 : index
    %17 = vector.load %arg7[%c0_14, %c0_15] : memref<1x32xf32, #tpu.memory_space<vmem>>, vector<1x32xf32>
    %18 = vector.broadcast %17 : vector<1x32xf32> to vector<8x32xf32>
    %19 = arith.addf %16, %18 : vector<8x32xf32>
    %cst_16 = arith.constant 0.000000e+00 : f32
    %20 = vector.broadcast %cst_16 : f32 to vector<8x32xf32>
    %21 = arith.maximumf %19, %20 : vector<8x32xf32>
    %c0_17 = arith.constant 0 : index
    %c0_18 = arith.constant 0 : index
    %22 = vector.load %arg8[%c0_17, %c0_18] : memref<1x32xf32, #tpu.memory_space<vmem>>, vector<1x32xf32>
    %cst_19 = arith.constant dense<0.000000e+00> : vector<1x8xf32>
    %23 = tpu.matmul %22, %21, %cst_19 {dimension_numbers = #tpu.dot_dimension_numbers<[1], [1], [0], [0], [0, 0, 1, 0], [], []>} : vector<1x32xf32>, vector<8x32xf32>, vector<1x8xf32> -> vector<1x8xf32>
    %c0_20 = arith.constant 0 : index
    %24 = memref.load %arg9[%c0_20] : memref<1xf32, #tpu.memory_space<smem>>
    %25 = vector.broadcast %24 : f32 to vector<1x8xf32>
    %26 = arith.addf %23, %25 : vector<1x8xf32>
    %c0_21 = arith.constant 0 : index
    %c0_22 = arith.constant 0 : index
    %27 = vector.load %arg10[%c0_21, %c0_22] : memref<1x8xf32, #tpu.memory_space<vmem>>, vector<1x8xf32>
    tpu.vector_store %arg10[%c0_21, %c0_22], %26 {strides = array<i32>} : memref<1x8xf32, #tpu.memory_space<vmem>>, vector<1x8xf32>,
    return
  }
  func.func @transform_0(%arg0: i32) -> (i32, i32) {
    %c0_i32 = arith.constant 0 : i32
    %c0_i32_0 = arith.constant 0 : i32
    return %arg0, %c0_i32 : i32, i32
  }
  func.func @transform_1(%arg0: i32) -> (i32, i32) {
    %c0_i32 = arith.constant 0 : i32
    %c0_i32_0 = arith.constant 0 : i32
    return %arg0, %c0_i32 : i32, i32
  }
  func.func @transform_2(%arg0: i32) -> (i32, i32) {
    %c0_i32 = arith.constant 0 : i32
    %c0_i32_0 = arith.constant 0 : i32
    %c0_i32_1 = arith.constant 0 : i32
    return %c0_i32, %c0_i32_0 : i32, i32
  }
  func.func @transform_3(%arg0: i32) -> (i32, i32) {
    %c0_i32 = arith.constant 0 : i32
    %c0_i32_0 = arith.constant 0 : i32
    %c0_i32_1 = arith.constant 0 : i32
    return %c0_i32, %c0_i32_0 : i32, i32
  }
  func.func @transform_4(%arg0: i32) -> (i32, i32) {
    %c0_i32 = arith.constant 0 : i32
    %c0_i32_0 = arith.constant 0 : i32
    %c0_i32_1 = arith.constant 0 : i32
    return %c0_i32, %c0_i32_0 : i32, i32
  }
  func.func @transform_5(%arg0: i32) -> (i32, i32) {
    %c0_i32 = arith.constant 0 : i32
    %c0_i32_0 = arith.constant 0 : i32
    %c0_i32_1 = arith.constant 0 : i32
    return %c0_i32, %c0_i32_0 : i32, i32
  }
  func.func @transform_6(%arg0: i32) -> (i32, i32) {
    %c0_i32 = arith.constant 0 : i32
    %c0_i32_0 = arith.constant 0 : i32
    %c0_i32_1 = arith.constant 0 : i32
    return %c0_i32, %c0_i32_0 : i32, i32
  }
  func.func @transform_7(%arg0: i32) -> (i32, i32) {
    %c0_i32 = arith.constant 0 : i32
    %c0_i32_0 = arith.constant 0 : i32
    %c0_i32_1 = arith.constant 0 : i32
    return %c0_i32, %c0_i32_0 : i32, i32
  }
  func.func @transform_8(%arg0: i32) -> i32 {
    %c0_i32 = arith.constant 0 : i32
    %c0_i32_0 = arith.constant 0 : i32
    return %c0_i32 : i32
  }
  func.func @transform_9(%arg0: i32) -> (i32, i32) {
    %c0_i32 = arith.constant 0 : i32
    %c0_i32_0 = arith.constant 0 : i32
    return %c0_i32, %arg0 : i32, i32
  }
}

</mosaic_0001>

<llo_original>
// kernel: tpu_custom_call.1
$region0: #{tpu_custom_call.1}
  #allocation0 [shape = 'u32[]', space=smem, size = 0x4, offset = 0x4, fixed_abs, tag = 'smem constant byte address 0x4 - core index']
  #allocation1 [shape = 'u32[144,128]{1,0:T(1,128)}', space=vmem, size = 0x12000, scoped, tag = 'internal scratch']
  #allocation2 [shape = 'f32[1]{0:T(128)S(6)}', space=smem, size = 0x200, scoped, tag = 'scoped memory for tpu_custom_call.1']
  %s0 = inlined_call_operand.vmem [shape: f32[8,12], index: 0, kind: input, shape index: {}]
  %s1 = inlined_call_operand.vmem [shape: f32[8,4], index: 1, kind: input, shape index: {}]
  %s2 = inlined_call_operand.hbm [shape: bf16[12,32], index: 2, kind: input, shape index: {}]
  %s3 = inlined_call_operand.vmem [shape: bf16[4,32], index: 3, kind: input, shape index: {}]
  %s4 = inlined_call_operand.vmem [shape: f32[1,32], index: 4, kind: input, shape index: {}]
  %s5 = inlined_call_operand.vmem [shape: bf16[32,32], index: 5, kind: input, shape index: {}]
  %s6 = inlined_call_operand.vmem [shape: f32[1,32], index: 6, kind: input, shape index: {}]
  %s7 = inlined_call_operand.vmem [shape: f32[1,32], index: 7, kind: input, shape index: {}]
  %s8 = inlined_call_operand.<no memory space> [shape: f32[1], index: 8, kind: input, shape index: {}]
  %s9 = inlined_call_operand.hbm [shape: f32[1,8], index: 9, kind: output, shape index: {}]
  %s10 = sld [smem:[#allocation0]]
  $region50: #{tpu_custom_call.1} parent=0
    _
  %s12 = ssub.s32 1, %s10
  %s13 = scalar_select 0, %s12, %s10
  %14 = sst [smem:[#allocation2]] %s8
  $region1: #{tpu_custom_call.1} parent=0
    #allocation3 [shape = 'u8[4096]{0}', space=vmem, size = 0x1000, scoped, tag = 'input window, operand 2, single buffered']
    #allocation4 [shape = 's32[1]{0}', space=sflag, size = 0x4, scoped, tag = 'scoped memory for tpu_custom_call.1']
    #allocation5 [shape = 's32[1]{0}', space=sflag, size = 0x4, scoped, tag = 'scoped memory for tpu_custom_call.1']
    #allocation6 [shape = 'u8[512]{0}', space=vmem, size = 0x400, scoped, tag = 'output window, operand 0, single buffered']
    %15 = vsyncpa [#allocation4], 0
    %16 = vsyncpa [#allocation5], 0
    // Predicated region
    $region2: #{tpu_custom_call.1} parent=1 // pred_check
      _
    $region3: #{tpu_custom_call.1} parent=1 // pred_check_branch
      %18 = sbr.rel (0) target = $region5
    $region4: #{tpu_custom_call.1} parent=1 // pred_region
      _
    $region5: #{tpu_custom_call.1} parent=1 // pred_fallthru
      _
    // Predicated region
    $region6: #{tpu_custom_call.1} parent=1 // pred_check
      _
    $region7: #{tpu_custom_call.1} parent=1 // pred_check_branch
      %20 = sbr.rel (0) target = $region9
    $region8: #{tpu_custom_call.1} parent=1 // pred_region
      _
    $region9: #{tpu_custom_call.1} parent=1 // pred_fallthru
      _
    // Predicated region
    $region10: #{tpu_custom_call.1} parent=1 // pred_check
      _
    $region11: #{tpu_custom_call.1} parent=1 // pred_check_branch
      %22 = sbr.rel (0) target = $region13
    $region12: #{tpu_custom_call.1} parent=1 // pred_region
      %s24 = ssub.s32 128, 128
      %25 = vsyncadd [#allocation4], %s24
      %s26 = sshll.u32 [#allocation3], 4
      %s27 = int_to_ptr.vmem [resolvable:$true] %s26
      %32 = dma.hbm_to_vmem [thread:$0]  %s2, 128, %s27, [#allocation4], 64, 64, 4
    $region13: #{tpu_custom_call.1} parent=1 // pred_fallthru
      _
    // Predicated region
    $region14: #{tpu_custom_call.1} parent=1 // pred_check
      _
    $region15: #{tpu_custom_call.1} parent=1 // pred_check_branch
      %34 = sbr.rel (0) target = $region17
    $region16: #{tpu_custom_call.1} parent=1 // pred_region
      _
    $region17: #{tpu_custom_call.1} parent=1 // pred_fallthru
      _
    // Predicated region
    $region18: #{tpu_custom_call.1} parent=1 // pred_check
      _
    $region19: #{tpu_custom_call.1} parent=1 // pred_check_branch
      %36 = sbr.rel (0) target = $region21
    $region20: #{tpu_custom_call.1} parent=1 // pred_region
      _
    $region21: #{tpu_custom_call.1} parent=1 // pred_fallthru
      _
    // Predicated region
    $region22: #{tpu_custom_call.1} parent=1 // pred_check
      _
    $region23: #{tpu_custom_call.1} parent=1 // pred_check_branch
      %38 = sbr.rel (0) target = $region25
    $region24: #{tpu_custom_call.1} parent=1 // pred_region
      _
    $region25: #{tpu_custom_call.1} parent=1 // pred_fallthru
      _
    // Predicated region
    $region26: #{tpu_custom_call.1} parent=1 // pred_check
      _
    $region27: #{tpu_custom_call.1} parent=1 // pred_check_branch
      %40 = sbr.rel (0) target = $region29
    $region28: #{tpu_custom_call.1} parent=1 // pred_region
      _
    $region29: #{tpu_custom_call.1} parent=1 // pred_fallthru
      _
    // Predicated region
    $region30: #{tpu_custom_call.1} parent=1 // pred_check
      _
    $region31: #{tpu_custom_call.1} parent=1 // pred_check_branch
      %42 = sbr.rel (0) target = $region33
    $region32: #{tpu_custom_call.1} parent=1 // pred_region
      _
    $region33: #{tpu_custom_call.1} parent=1 // pred_fallthru
      _
    // Predicated region
    $region34: #{tpu_custom_call.1} parent=1 // pred_check
      _
    $region35: #{tpu_custom_call.1} parent=1 // pred_check_branch
      %44 = sbr.rel (0) target = $region37
    $region36: #{tpu_custom_call.1} parent=1 // pred_region
      _
    $region37: #{tpu_custom_call.1} parent=1 // pred_fallthru
      _
    // Predicated region
    $region38: #{tpu_custom_call.1} parent=1 // pred_check
      _
    $region39: #{tpu_custom_call.1} parent=1 // pred_check_branch
      %46 = sbr.rel (0) target = $region41
    $region40: #{tpu_custom_call.1} parent=1 // pred_region
      %47 = dma.done [#allocation4], 128
    $region41: #{tpu_custom_call.1} parent=1 // pred_fallthru
      _
    %v49 = vld [vmem:[%s0] sm:$0xff]
    %v50 = vpack.c.bf16 %v49, %v49
    %v51 = vld [vmem:[%s1] sm:$0xff]
    %v52 = vpack.c.bf16 %v51, %v51
    %v53 = vld [vmem:[#allocation3] sm:$0xf]
    %v54 = vld [vmem:[#allocation3 + $0x4] sm:$0x3]
    %v55 = vld [vmem:[%s3] sm:$0x3]
    %vm56 = vcmask 31744
    %v58 = vsel %vm56, %v52, 0
    %vm60 = vcmask 1041408
    %v62 = vsel %vm60, %v55, 0
    %64 = vmatprep.subr.bf16.mxu0 0
    %65 = vmatpush1.bf16.msra.mxu0 %v62
    %66 = vmatprep.subr.bf16.mxu0 0
    %67 = vmatpush1.bf16.msra.mxu0 0
    %68 = vmatprep.subr.bf16.mxu0 0
    %69 = vmatpush1.bf16.msra.mxu0 0
    %70 = vmatprep.subr.bf16.mxu0 0
    %71 = vmatpush1.bf16.msra.mxu0 0
    %72 = vmatprep.subr.bf16.mxu0 0
    %73 = vmatpush1.bf16.msra.mxu0 0
    %74 = vmatprep.subr.bf16.mxu0 0
    %75 = vmatpush1.bf16.msra.mxu0 0
    %76 = vmatprep.subr.bf16.mxu0 0
    %77 = vmatpush1.bf16.msra.mxu0 0
    %78 = vmatprep.subr.bf16.mxu0 0
    %79 = vmatpush1.bf16.msra.mxu0 0
    %80 = vmatprep.subr.bf16.mxu0 0
    %81 = vmatpush1.bf16.msra.mxu0 0
    %82 = vmatprep.subr.bf16.mxu0 0
    %83 = vmatpush1.bf16.msra.mxu0 0
    %84 = vmatprep.subr.bf16.mxu0 0
    %85 = vmatpush1.bf16.msra.mxu0 0
    %86 = vmatprep.subr.bf16.mxu0 0
    %87 = vmatpush1.bf16.msra.mxu0 0
    %88 = vmatprep.subr.bf16.mxu0 0
    %89 = vmatpush1.bf16.msra.mxu0 0
    %90 = vmatprep.subr.bf16.mxu0 0
    %91 = vmatpush1.bf16.msra.mxu0 0
    %92 = vmatprep.subr.bf16.mxu0 0
    %93 = vmatpush1.bf16.msra.mxu0 0
    %94 = vmatprep.subr.bf16.mxu0 0
    %95 = vmatpush1.bf16.msra.mxu0 0
    %96 = vmatprep.mubr.bf16.mxu0 0
    %97 = vmatmul.mubr.bf16.gmra.mrb[0].mxu0 %v58
    %v98 = vpop.f32.mrb[0].mxu0
    %v99 = vadd.f32 0.0, %v98
    %v100 = vpop.f32.mrb[0].mxu0
    %v101 = vpop.f32.mrb[0].mxu0
    %v102 = vpop.f32.mrb[0].mxu0
    %103 = vdwg.mxu0
    %v106 = vunpack.c.l.b16 %v53
    %v107 = vunpack.c.l.b16 %v54
    %v108 = vpack.c.b16 %v107, %v106
    %vm109 = vcmask 97280
    %v111 = vsel %vm109, %v50, 0
    %vm113 = vcmask 1045504
    %v115 = vsel %vm113, %v108, 0
    %117 = vmatprep.subr.bf16.mxu0 0
    %118 = vmatpush1.bf16.msra.mxu0 %v115
    %119 = vmatprep.subr.bf16.mxu0 0
    %120 = vmatpush1.bf16.msra.mxu0 0
    %121 = vmatprep.subr.bf16.mxu0 0
    %122 = vmatpush1.bf16.msra.mxu0 0
    %123 = vmatprep.subr.bf16.mxu0 0
    %124 = vmatpush1.bf16.msra.mxu0 0
    %125 = vmatprep.subr.bf16.mxu0 0
    %126 = vmatpush1.bf16.msra.mxu0 0
    %127 = vmatprep.subr.bf16.mxu0 0
    %128 = vmatpush1.bf16.msra.mxu0 0
    %129 = vmatprep.subr.bf16.mxu0 0
    %130 = vmatpush1.bf16.msra.mxu0 0
    %131 = vmatprep.subr.bf16.mxu0 0
    %132 = vmatpush1.bf16.msra.mxu0 0
    %133 = vmatprep.subr.bf16.mxu0 0
    %134 = vmatpush1.bf16.msra.mxu0 0
    %135 = vmatprep.subr.bf16.mxu0 0
    %136 = vmatpush1.bf16.msra.mxu0 0
    %137 = vmatprep.subr.bf16.mxu0 0
    %138 = vmatpush1.bf16.msra.mxu0 0
    %139 = vmatprep.subr.bf16.mxu0 0
    %140 = vmatpush1.bf16.msra.mxu0 0
    %141 = vmatprep.subr.bf16.mxu0 0
    %142 = vmatpush1.bf16.msra.mxu0 0
    %143 = vmatprep.subr.bf16.mxu0 0
    %144 = vmatpush1.bf16.msra.mxu0 0
    %145 = vmatprep.subr.bf16.mxu0 0
    %146 = vmatpush1.bf16.msra.mxu0 0
    %147 = vmatprep.subr.bf16.mxu0 0
    %148 = vmatpush1.bf16.msra.mxu0 0
    %149 = vmatprep.mubr.bf16.mxu0 0
    %150 = vmatmul.mubr.bf16.gmra.mrb[0].mxu0 %v111
    %v151 = vpop.f32.mrb[0].mxu0
    %v152 = vadd.f32 %v99, %v151
    %v153 = vpop.f32.mrb[0].mxu0
    %v154 = vpop.f32.mrb[0].mxu0
    %v155 = vpop.f32.mrb[0].mxu0
    %156 = vdwg.mxu0
    %v157 = vld [vmem:[%s4] sm:$0x1]
    %v159 = vlaneseq
    %v160 = vshrl.u32 %v159, 7
    %v161 = vsub.s32 0, %v160
    %v162 = vrot.slane %v157, %v161
    %v164 = vadd.f32 %v152, %v162
    %v165 = vmax.f32 %v164, 0.0
    %v166 = vpack.c.bf16 %v165, %v165
    %v167 = vld [vmem:[%s5] sm:$0xf]
    %v168 = vld [vmem:[%s5 + $0x4] sm:$0xf]
    %v169 = vld [vmem:[%s5 + $0x8] sm:$0xf]
    %v170 = vld [vmem:[%s5 + $0xc] sm:$0xf]
    %v171 = vld [vmem:[%s6] sm:$0x1]
    %v173 = vlaneseq
    %v174 = vshrl.u32 %v173, 7
    %v175 = vsub.s32 0, %v174
    %v176 = vrot.slane %v171, %v175
    %v182 = vunpack.c.l.b16 %v167
    %v183 = vunpack.c.l.b16 %v168
    %v184 = vunpack.c.l.b16 %v169
    %v185 = vunpack.c.l.b16 %v170
    %v186 = vpack.c.b16 %v183, %v182
    %v187 = vpack.c.b16 %v185, %v184
    %vm190 = vcmask 261120
    %v192 = vsel %vm190, %v166, 0
    %194 = vmatprep.subr.bf16.mxu0 0
    %195 = vmatpush1.bf16.msra.mxu0 %v186
    %196 = vmatprep.subr.bf16.mxu0 0
    %197 = vmatpush1.bf16.msra.mxu0 %v187
    %198 = vmatprep.subr.bf16.mxu0 0
    %199 = vmatpush1.bf16.msra.mxu0 0
    %200 = vmatprep.subr.bf16.mxu0 0
    %201 = vmatpush1.bf16.msra.mxu0 0
    %202 = vmatprep.subr.bf16.mxu0 0
    %203 = vmatpush1.bf16.msra.mxu0 0
    %204 = vmatprep.subr.bf16.mxu0 0
    %205 = vmatpush1.bf16.msra.mxu0 0
    %206 = vmatprep.subr.bf16.mxu0 0
    %207 = vmatpush1.bf16.msra.mxu0 0
    %208 = vmatprep.subr.bf16.mxu0 0
    %209 = vmatpush1.bf16.msra.mxu0 0
    %210 = vmatprep.subr.bf16.mxu0 0
    %211 = vmatpush1.bf16.msra.mxu0 0
    %212 = vmatprep.subr.bf16.mxu0 0
    %213 = vmatpush1.bf16.msra.mxu0 0
    %214 = vmatprep.subr.bf16.mxu0 0
    %215 = vmatpush1.bf16.msra.mxu0 0
    %216 = vmatprep.subr.bf16.mxu0 0
    %217 = vmatpush1.bf16.msra.mxu0 0
    %218 = vmatprep.subr.bf16.mxu0 0
    %219 = vmatpush1.bf16.msra.mxu0 0
    %220 = vmatprep.subr.bf16.mxu0 0
    %221 = vmatpush1.bf16.msra.mxu0 0
    %222 = vmatprep.subr.bf16.mxu0 0
    %223 = vmatpush1.bf16.msra.mxu0 0
    %224 = vmatprep.subr.bf16.mxu0 0
    %225 = vmatpush1.bf16.msra.mxu0 0
    %226 = vmatprep.mubr.bf16.mxu0 0
    %227 = vmatmul.mubr.bf16.gmra.mrb[0].mxu0 %v192
    %v228 = vpop.f32.mrb[0].mxu0
    %v229 = vadd.f32 %v176, %v228
    %v230 = vpop.f32.mrb[0].mxu0
    %v231 = vpop.f32.mrb[0].mxu0
    %v232 = vpop.f32.mrb[0].mxu0
    %233 = vdwg.mxu0
    %v234 = vmax.f32 %v229, 0.0
    %v235 = vld [vmem:[%s7] sm:$0x1]
    %s236 = sld [smem:[#allocation2]]
    %v237 = vstv %s236
    %v239 = vsel %vm190, %v235, 0
    %v242 = vsel %vm190, %v234, 0
    %244 = vmatprep.subr.mxu0 0.0
    %245 = vmatpush1.xpose.msra.mxu0 %v242
    %246 = vmatprep.subr.mxu0 0.0
    %247 = vmatpush1.xpose.msra.mxu0 0.0
    %248 = vmatprep.subr.mxu0 0.0
    %249 = vmatpush1.xpose.msra.mxu0 0.0
    %250 = vmatprep.subr.mxu0 0.0
    %251 = vmatpush1.xpose.msra.mxu0 0.0
    %252 = vmatprep.subr.mxu0 0.0
    %253 = vmatpush1.xpose.msra.mxu0 0.0
    %254 = vmatprep.subr.mxu0 0.0
    %255 = vmatpush1.xpose.msra.mxu0 0.0
    %256 = vmatprep.subr.mxu0 0.0
    %257 = vmatpush1.xpose.msra.mxu0 0.0
    %258 = vmatprep.subr.mxu0 0.0
    %259 = vmatpush1.xpose.msra.mxu0 0.0
    %260 = vmatprep.subr.mxu0 0.0
    %261 = vmatpush1.xpose.msra.mxu0 0.0
    %262 = vmatprep.subr.mxu0 0.0
    %263 = vmatpush1.xpose.msra.mxu0 0.0
    %264 = vmatprep.subr.mxu0 0.0
    %265 = vmatpush1.xpose.msra.mxu0 0.0
    %266 = vmatprep.subr.mxu0 0.0
    %267 = vmatpush1.xpose.msra.mxu0 0.0
    %268 = vmatprep.subr.mxu0 0.0
    %269 = vmatpush1.xpose.msra.mxu0 0.0
    %270 = vmatprep.subr.mxu0 0.0
    %271 = vmatpush1.xpose.msra.mxu0 0.0
    %272 = vmatprep.subr.mxu0 0.0
    %273 = vmatpush1.xpose.msra.mxu0 0.0
    %274 = vmatprep.subr.mxu0 0.0
    %275 = vmatpush1.xpose.msra.mxu0 0.0
    %276 = vmatprep.subr.mxu0 0.0
    %277 = vmatpush1.xpose.msra.mxu0 0.0
    %278 = vmatprep.subr.mxu0 0.0
    %279 = vmatpush1.xpose.msra.mxu0 0.0
    %280 = vmatprep.subr.mxu0 0.0
    %281 = vmatpush1.xpose.msra.mxu0 0.0
    %282 = vmatprep.subr.mxu0 0.0
    %283 = vmatpush1.xpose.msra.mxu0 0.0
    %284 = vmatprep.subr.mxu0 0.0
    %285 = vmatpush1.xpose.msra.mxu0 0.0
    %286 = vmatprep.subr.mxu0 0.0
    %287 = vmatpush1.xpose.msra.mxu0 0.0
    %288 = vmatprep.subr.mxu0 0.0
    %289 = vmatpush1.xpose.msra.mxu0 0.0
    %290 = vmatprep.subr.mxu0 0.0
    %291 = vmatpush1.xpose.msra.mxu0 0.0
    %292 = vmatprep.subr.mxu0 0.0
    %293 = vmatpush1.xpose.msra.mxu0 0.0
    %294 = vmatprep.subr.mxu0 0.0
    %295 = vmatpush1.xpose.msra.mxu0 0.0
    %296 = vmatprep.subr.mxu0 0.0
    %297 = vmatpush1.xpose.msra.mxu0 0.0
    %298 = vmatprep.subr.mxu0 0.0
    %299 = vmatpush1.xpose.msra.mxu0 0.0
    %300 = vmatprep.subr.mxu0 0.0
    %301 = vmatpush1.xpose.msra.mxu0 0.0
    %302 = vmatprep.subr.mxu0 0.0
    %303 = vmatpush1.xpose.msra.mxu0 0.0
    %304 = vmatprep.subr.mxu0 0.0
    %305 = vmatpush1.xpose.msra.mxu0 0.0
    %306 = vmatprep.subr.mxu0 0.0
    %307 = vmatpush1.xpose.msra.mxu0 0.0
    %308 = vmatprep.mubr.f32.mxu0 0.0
    %309 = vmatmul.mubr.f32.gmra.mrb[0].mxu0 %v239
    %v310 = vpop.f32.mrb[0].mxu0
    %v311 = vadd.f32 %v237, %v310
    %v312 = vpop.f32.mrb[0].mxu0
    %313 = vdwg.mxu0
    %vm314 = vcmask 57344
    %315 = vst.msk [vmem:[#allocation6] sm:$0x1] %vm314, %v311
    // Predicated region
    $region42: #{tpu_custom_call.1} parent=1 // pred_check
      _
    $region43: #{tpu_custom_call.1} parent=1 // pred_check_branch
      %317 = sbr.rel (0) target = $region45
    $region44: #{tpu_custom_call.1} parent=1 // pred_region
      %s319 = ssub.s32 16, 16
      %320 = vsyncadd [#allocation5], %s319
      %s322 = sshll.u32 [#allocation6], 4
      %s323 = int_to_ptr.vmem [resolvable:$true] %s322
      %325 = dma.vmem_to_hbm [thread:$0]  %s323, 16, %s9, [#allocation5]
    $region45: #{tpu_custom_call.1} parent=1 // pred_fallthru
      _
    // Predicated region
    $region46: #{tpu_custom_call.1} parent=1 // pred_check
      _
    $region47: #{tpu_custom_call.1} parent=1 // pred_check_branch
      %327 = sbr.rel (0) target = $region49
    $region48: #{tpu_custom_call.1} parent=1 // pred_region
      %328 = dma.done [#allocation5], 16
    $region49: #{tpu_custom_call.1} parent=1 // pred_fallthru
      _
    %329 = vsyncpa [#allocation4], 1
    %330 = vsyncpa [#allocation5], 1

</llo_original>
